<compile_context>
chip_gen: v7x
topology: tpu7x:2x2x1
jax: 0.10.0
libtpu: 0.0.40
codegen_flags: <defaults>
</compile_context>

<pallas_src>
import functools

import jax
import jax.numpy as jnp
from jax.experimental import pallas as pl
from jax.experimental.pallas import tpu as pltpu


def _unsup_nll_kernel(bn_ref, est_hbm, ls_ref, out_ref, est_vmem, dma_sem,
                      *, batch_size, cur_batchsize, n_classes):
    # bn_ref:   (1,) int32 SMEM   (scalar prefetch)
    # est_hbm:  (N_total, n_classes) ref left in HBM (pl.ANY)
    # ls_ref:   (cur_batchsize, C) VMEM (full logsoftmax_outs)
    # out_ref:  (1, 1) f32 SMEM
    # est_vmem: (cur_batchsize, n_classes) VMEM scratch
    # dma_sem:  DMA semaphore

    row_start = bn_ref[0] * batch_size
    if batch_size % 8 == 0:
        # compile-time hint: sublane-aligned DMA source offset
        row_start = pl.multiple_of(row_start, 8)

    # Fused dynamic row slice: DMA only the rows we need, HBM -> VMEM.
    cp = pltpu.make_async_copy(
        est_hbm.at[pl.ds(row_start, cur_batchsize)],
        est_vmem,
        dma_sem,
    )
    cp.start()
    cp.wait()

    est = est_vmem[...].astype(jnp.float32)
    ls = ls_ref[:, 0:n_classes].astype(jnp.float32)  # in-kernel column slice [:, 0:10]
    total = jnp.sum(est * ls)

    # cur_batchsize is static per compile (matches `cur = len(logsoftmax_outs)`);
    # a distinct final-batch size triggers a recompile, which is expected.
    out_ref[0, 0] = -total * (1.0 / cur_batchsize)


def unsup_nll_forward(est_y, bn, logsoftmax_outs, batch_size):
    """JAX/Pallas equivalent of unsup_nll(batch_size).forward(est_y, bn, logsoftmax_outs)."""
    cur_batchsize, n_cols_ls = logsoftmax_outs.shape
    n_classes = est_y.shape[1]  # module uses logsoftmax_outs[:, 0:10]; est_y has 10 cols
    assert n_cols_ls >= n_classes

    # Guard the OOB edge case when bn is concrete (PyTorch would silently clamp).
    if isinstance(bn, int):
        assert bn * batch_size + cur_batchsize <= est_y.shape[0], "row slice out of range"

    bn_arr = jnp.asarray([bn], dtype=jnp.int32)

    kernel = functools.partial(
        _unsup_nll_kernel,
        batch_size=batch_size,
        cur_batchsize=cur_batchsize,
        n_classes=n_classes,
    )

    out = pl.pallas_call(
        kernel,
        out_shape=jax.ShapeDtypeStruct((1, 1), jnp.float32),
        grid_spec=pltpu.PrefetchScalarGridSpec(
            num_scalar_prefetch=1,
            grid=(1,),
            in_specs=[
                # est_y stays in HBM; the kernel DMAs only the selected rows.
                pl.BlockSpec(memory_space=pl.ANY),
                # logsoftmax_outs is small: pass it whole into VMEM, slice in-kernel.
                pl.BlockSpec(memory_space=pltpu.MemorySpace.VMEM),
            ],
            out_specs=pl.BlockSpec(memory_space=pltpu.MemorySpace.SMEM),
            scratch_shapes=[
                pltpu.VMEM((cur_batchsize, n_classes), est_y.dtype),
                pltpu.SemaphoreType.DMA,
            ],
        ),
        compiler_params=pltpu.CompilerParams(
            dimension_semantics=("arbitrary",)),
    )(bn_arr, est_y, logsoftmax_outs)
    return out[0, 0]


if __name__ == "__main__":
    key = jax.random.PRNGKey(0)
    k1, k2 = jax.random.split(key)

    batch_size = 8          # module's self.batchsize
    n_total = 32            # total rows in est_y (dataset-sized label estimate)
    n_classes_out = 16      # logsoftmax_outs has >=10 columns; first 10 are used
    bn = 2                  # batch index
    cur_batchsize = 8       # len(logsoftmax_outs)

    # deterministic synthetic inputs
    est_y = jax.nn.softmax(jax.random.normal(k1, (n_total, 10), jnp.float32), axis=-1)
    logits = jax.random.normal(k2, (cur_batchsize, n_classes_out), jnp.float32)
    logsoftmax_outs = jax.nn.log_softmax(logits, axis=-1)

    loss = unsup_nll_forward(est_y, bn, logsoftmax_outs, batch_size)
    loss = jax.block_until_ready(loss)

    # cross-check against pure-JAX reference
    ref = -jnp.sum(
        est_y[bn * batch_size: bn * batch_size + cur_batchsize, :]
        * logsoftmax_outs[:, 0:10]
    ) / cur_batchsize
    assert jnp.allclose(loss, ref, rtol=1e-5, atol=1e-5), (loss, ref)

    print("KERNEL_OK")
</pallas_src>

<mosaic_0001>
module attributes {stable_mosaic.version = 11 : i64} {
  func.func @_unsup_nll_kernel(%arg0: i32, %arg1: memref<1xi32, #tpu.memory_space<smem>>, %arg2: memref<32x10xf32, #tpu.memory_space<any>>, %arg3: memref<8x16xf32, #tpu.memory_space<vmem>>, %arg4: memref<1x1xf32, #tpu.memory_space<smem>>, %arg5: memref<8x10xf32, #tpu.memory_space<vmem>>, %arg6: memref<!tpu.dma_semaphore, #tpu.memory_space<semaphore_mem>>) attributes {dimension_semantics = [#tpu.dimension_semantics<arbitrary>], iteration_bounds = array<i64: 1>, scalar_prefetch = 1 : i64, scratch_operands = 2 : i64, tpu.core_type = #tpu.core_type<tc>, window_params = [{}, {pipeline_mode = #tpu.pipeline_mode<synchronous>, transform_indices = @transform_1, window_bounds = array<i64: 8, 16>}, {transform_indices = @transform_2, window_bounds = array<i64: 1, 1>}]} {
    %c0 = arith.constant 0 : index
    %0 = memref.load %arg1[%c0] : memref<1xi32, #tpu.memory_space<smem>>
    %c8_i32 = arith.constant 8 : i32
    %1 = arith.muli %0, %c8_i32 : i32
    %2 = tpu.assume_multiple %1, 8 : i32
    %c0_i32 = arith.constant 0 : i32
    %3 = tpu.memref_slice %arg2[%2, %c0_i32] : memref<32x10xf32, #tpu.memory_space<any>> -> memref<8x10xf32, #tpu.memory_space<any>>
    tpu.enqueue_dma source(%3 : memref<8x10xf32, #tpu.memory_space<any>>) target(%arg5 : memref<8x10xf32, #tpu.memory_space<vmem>>) target_semaphore(%arg6 : memref<!tpu.dma_semaphore, #tpu.memory_space<semaphore_mem>>)
    %c0_i32_0 = arith.constant 0 : i32
    %4 = tpu.memref_slice %arg2[%2, %c0_i32_0] : memref<32x10xf32, #tpu.memory_space<any>> -> memref<8x10xf32, #tpu.memory_space<any>>
    tpu.wait_dma2 semaphore(%arg6 : memref<!tpu.dma_semaphore, #tpu.memory_space<semaphore_mem>>) src(%4 : memref<8x10xf32, #tpu.memory_space<any>>) dst(%arg5 : memref<8x10xf32, #tpu.memory_space<vmem>>)
    %c0_1 = arith.constant 0 : index
    %c0_2 = arith.constant 0 : index
    %5 = vector.load %arg5[%c0_1, %c0_2] : memref<8x10xf32, #tpu.memory_space<vmem>>, vector<8x10xf32>
    %c0_3 = arith.constant 0 : index
    %c0_4 = arith.constant 0 : index
    %6 = vector.load %arg3[%c0_3, %c0_4] : memref<8x16xf32, #tpu.memory_space<vmem>>, vector<8x10xf32>
    %7 = arith.mulf %5, %6 : vector<8x10xf32>
    %8 = vector.shape_cast %7 : vector<8x10xf32> to vector<1x8x10xf32>
    %cst = arith.constant dense<0.000000e+00> : vector<1xf32>
    %9 = vector.multi_reduction <add>, %8, %cst [1, 2] : vector<1x8x10xf32> to vector<1xf32>
    %10 = vector.shape_cast %9 : vector<1xf32> to vector<1x1x1xf32>
    %11 = vector.extract %10[0, 0, 0] : f32 from vector<1x1x1xf32>
    %cst_5 = arith.constant 0.000000e+00 : f32
    %12 = arith.subf %cst_5, %11 : f32
    %cst_6 = arith.constant 1.250000e-01 : f32
    %13 = arith.mulf %12, %cst_6 : f32
    %c0_7 = arith.constant 0 : index
    %c0_8 = arith.constant 0 : index
    %14 = memref.load %arg4[%c0_7, %c0_8] : memref<1x1xf32, #tpu.memory_space<smem>>
    memref.store %13, %arg4[%c0_7, %c0_8] : memref<1x1xf32, #tpu.memory_space<smem>>
    return
  }
  func.func @transform_1(%arg0: i32, %arg1: memref<1xi32, #tpu.memory_space<smem>>) -> (i32, i32) {
    %c0_i32 = arith.constant 0 : i32
    %c0_i32_0 = arith.constant 0 : i32
    %c0_i32_1 = arith.constant 0 : i32
    return %c0_i32, %c0_i32_0 : i32, i32
  }
  func.func @transform_2(%arg0: i32, %arg1: memref<1xi32, #tpu.memory_space<smem>>) -> (i32, i32) {
    %c0_i32 = arith.constant 0 : i32
    %c0_i32_0 = arith.constant 0 : i32
    %c0_i32_1 = arith.constant 0 : i32
    return %c0_i32, %c0_i32_0 : i32, i32
  }
}

</mosaic_0001>

<llo_original>
// kernel: tpu_custom_call.1
$region0: #{tpu_custom_call.1}
  #allocation0 [shape = 'u32[]', space=smem, size = 0x4, offset = 0x4, fixed_abs, tag = 'smem constant byte address 0x4 - core index']
  #allocation1 [shape = 'u32[144,128]{1,0:T(1,128)}', space=vmem, size = 0x12000, scoped, tag = 'internal scratch']
  #allocation2 [shape = 'f32[8,10]{1,0:T(8,128)}', space=vmem, size = 0x1000, scoped, tag = 'scratch operand']
  #allocation3 [shape = 's32[1]{0}', space=sflag, size = 0x4, scoped, tag = 'scratch operand']
  #allocation4 [shape = 's32[1]{0}', space=sflag, size = 0x4, scoped, tag = 'scoped memory for tpu_custom_call.1']
  #allocation5 [shape = 's32[1]{0:T(128)S(6)}', space=smem, size = 0x200, scoped, tag = 'prefetched SMEM operand 0']
  #allocation8 [shape = 's32[]', space=sflag, size = 0x4, offset = 0, fixed_abs, tag = 'sflag constant byte address 0x0 - dummy sync flag']
  %s0 = inlined_call_operand.<no memory space> [shape: s32[1], index: 0, kind: input, shape index: {}]
  %s1 = inlined_call_operand.vmem [shape: f32[32,10], index: 1, kind: input, shape index: {}]
  %s2 = inlined_call_operand.vmem [shape: f32[8,16], index: 2, kind: input, shape index: {}]
  %s3 = inlined_call_operand.hbm [shape: f32[1,1], index: 3, kind: output, shape index: {}]
  %s4 = sld [smem:[#allocation0]]
  $region48: #{tpu_custom_call.1} parent=0
    _
  %s6 = ssub.s32 1, %s4
  %s7 = scalar_select 0, %s6, %s4
  %8 = sst [smem:[#allocation5]] %s0
  $region1: #{tpu_custom_call.1} parent=0
    #allocation6 [shape = 'u8[512]{0}', space=smem, size = 0x200, scoped, tag = 'output window, operand 0, single buffered']
    #allocation7 [shape = 's32[1]{0}', space=sflag, size = 0x4, scoped, tag = 'scoped memory for tpu_custom_call.1']
    %9 = vsyncpa [#allocation7], 0
    // Predicated region
    $region2: #{tpu_custom_call.1} parent=1 // pred_check
      _
    $region3: #{tpu_custom_call.1} parent=1 // pred_check_branch
      %11 = sbr.rel (0) target = $region5
    $region4: #{tpu_custom_call.1} parent=1 // pred_region
      _
    $region5: #{tpu_custom_call.1} parent=1 // pred_fallthru
      _
    %s12 = sld [smem:[#allocation5]]
    %s13 = smul.u32 %s12, 8
    %s14 = scalar_lea.vmem %s1, %s13
    %p16 = scmp.lt.u32.totalorder 8, 8
    %p17 = pneg %p16
    // Predicated region
    $region6: #{tpu_custom_call.1} parent=1 // pred_check
      _
    $region7: #{tpu_custom_call.1} parent=1 // pred_check_branch
      %19 = sbr.rel (%p16) target = $region9
    $region8: #{tpu_custom_call.1} parent=1 // pred_region
      %s34 = sand.u32 8, 7
      %p35 = scmp.eq.s32.totalorder %s34, 0
      // Predicated region
      $region21: #{tpu_custom_call.1} parent=8 // pred_check
        %p36 = pneg %p35
      $region22: #{tpu_custom_call.1} parent=8 // pred_check_branch
        %38 = sbr.rel (%p36) target = $region24
      $region23: #{tpu_custom_call.1} parent=8 // pred_region
        loop: start=0, step=1, limit=1
        $region25: #{tpu_custom_call.1} parent=23 // loop_pre_header
          _
        $region26: #{tpu_custom_call.1} parent=23 // loop_header
          %s40 = sphi 0, %s44
          %p41 = scmp.ge.s32.totalorder %s40, 1
          %s45 = sphi %s14, %s14
          %s46 = sphi [#allocation2], [#allocation2]
        $region27: #{tpu_custom_call.1} parent=23 // loop_header_branch
          %43 = sbr.rel (%p41) target = $region31
        $region28: #{tpu_custom_call.1} parent=23 // loop_body
          %v47 = vld [vmem:[%s45] sm:$0xff]
          %48 = vst [vmem:[%s46] sm:$0xff] %v47
        $region29: #{tpu_custom_call.1} parent=23 // loop_footer
          %s44 = sadd.s32 1, %s40
        $region30: #{tpu_custom_call.1} parent=23 // loop_footer_branch
          %39 = sbr.rel target = $region26
        $region31: #{tpu_custom_call.1} parent=23 // loop_exit
          _
      $region24: #{tpu_custom_call.1} parent=8 // pred_fallthru
        _
      %p49 = pneg %p35
      // Predicated region
      $region32: #{tpu_custom_call.1} parent=8 // pred_check
        _
      $region33: #{tpu_custom_call.1} parent=8 // pred_check_branch
        %51 = sbr.rel (%p35) target = $region35
      $region34: #{tpu_custom_call.1} parent=8 // pred_region
        %s52 = sand.u32 8, 7
      $region35: #{tpu_custom_call.1} parent=8 // pred_fallthru
        _
    $region9: #{tpu_custom_call.1} parent=1 // pred_fallthru
      _
    // Predicated region
    $region10: #{tpu_custom_call.1} parent=1 // pred_check
      %p20 = pneg %p16
    $region11: #{tpu_custom_call.1} parent=1 // pred_check_branch
      %22 = sbr.rel (%p20) target = $region13
    $region12: #{tpu_custom_call.1} parent=1 // pred_region
      %s23 = sshllo.u32 0, 8
      loop: start=0, step=1, limit=1
      $region14: #{tpu_custom_call.1} parent=12 // loop_pre_header
        _
      $region15: #{tpu_custom_call.1} parent=12 // loop_header
        %s25 = sphi 0, %s29
        %p26 = scmp.ge.s32.totalorder %s25, 1
        %s30 = sphi %s14, %s14
        %s31 = sphi [#allocation2], [#allocation2]
      $region16: #{tpu_custom_call.1} parent=12 // loop_header_branch
        %28 = sbr.rel (%p26) target = $region20
      $region17: #{tpu_custom_call.1} parent=12 // loop_body
        %v32 = vld [vmem:[%s30] sm:%s23]
        %33 = vst [vmem:[%s31] sm:%s23] %v32
      $region18: #{tpu_custom_call.1} parent=12 // loop_footer
        %s29 = sadd.s32 1, %s25
      $region19: #{tpu_custom_call.1} parent=12 // loop_footer_branch
        %24 = sbr.rel target = $region15
      $region20: #{tpu_custom_call.1} parent=12 // loop_exit
        _
    $region13: #{tpu_custom_call.1} parent=1 // pred_fallthru
      _
    // Predicated region
    $region36: #{tpu_custom_call.1} parent=1 // pred_check
      _
    $region37: #{tpu_custom_call.1} parent=1 // pred_check_branch
      %55 = sbr.rel (0) target = $region39
    $region38: #{tpu_custom_call.1} parent=1 // pred_region
      %56 = vsyncadd [#allocation3], 128
    $region39: #{tpu_custom_call.1} parent=1 // pred_fallthru
      _
    %s57 = smul.u32 8, 1
    %s58 = sshll.u32 %s57, 4
    %59 = dma.done [#allocation3], %s58
    %v60 = vld [vmem:[#allocation2] sm:$0xff]
    %v61 = vld [vmem:[%s2] sm:$0xff]
    %v62 = vmul.f32 %v60, %v61
    %vm63 = vcmask 80896
    %v64 = vsel %vm63, %v62, 0.0
    %65 = vadd.xlane.f32.xlu0 %v64
    %v66 = vpop.xlane.xlu0 %65
    %v67 = vrot.slane %v66, 4
    %v68 = vadd.f32 %v66, %v67
    %v69 = vrot.slane %v68, 2
    %v70 = vadd.f32 %v68, %v69
    %v71 = vrot.slane %v70, 1
    %v72 = vadd.f32 %v70, %v71
    %s73 = vtos %v72
    %s74 = ssub.f32 0.0, %s73
    %s75 = smul.f32 %s74, 0.125
    %s76 = scalar_lea.smem [#allocation6], 0
    %77 = sst [smem:[%s76]] %s75
    // Predicated region
    $region40: #{tpu_custom_call.1} parent=1 // pred_check
      _
    $region41: #{tpu_custom_call.1} parent=1 // pred_check_branch
      %79 = sbr.rel (0) target = $region43
    $region42: #{tpu_custom_call.1} parent=1 // pred_region
      %s81 = ssub.s32 16, 16
      %82 = vsyncadd [#allocation7], %s81
      %85 = dma.smem_to_hbm [#allocation6], 16, %s3, [#allocation7]
    $region43: #{tpu_custom_call.1} parent=1 // pred_fallthru
      _
    // Predicated region
    $region44: #{tpu_custom_call.1} parent=1 // pred_check
      _
    $region45: #{tpu_custom_call.1} parent=1 // pred_check_branch
      %87 = sbr.rel (0) target = $region47
    $region46: #{tpu_custom_call.1} parent=1 // pred_region
      %88 = dma.done [#allocation7], 16
    $region47: #{tpu_custom_call.1} parent=1 // pred_fallthru
      _
    %89 = sfence
    %90 = vsyncpa [#allocation7], 1
  %91 = vsyncmov [#allocation3]
  %s92 = vpop.sfrf %91
  %p93 = scmp.eq.s32.totalorder %s92, 0
  %p94 = pneg %p93
  %96 = shalt.err (%p94)

</llo_original>
